<compile_context>
chip_gen: v6e
topology: v6e:2x2x1
jax: 0.10.0
libtpu: 0.0.40
codegen_flags: <defaults>
</compile_context>

<pallas_src>
import functools

import jax
import jax.numpy as jnp
from jax.experimental import pallas as pl
from jax.experimental.pallas import tpu as pltpu


def _round_up(a: int, m: int) -> int:
    return ((a + m - 1) // m) * m


def linear_add_kernel(x_ref, w_ref, b_ref, other_ref, o_ref):
    # One MXU matmul with a fused epilogue; no accumulator, no K loop.
    o_ref[...] = (
        jnp.dot(x_ref[...], w_ref[...], preferred_element_type=jnp.float32)
        + b_ref[...]
        + other_ref[...]
    ).astype(o_ref.dtype)


@functools.partial(jax.jit, static_argnames=("tm", "tn"))
def linear_add(x, w_t, b, other, *, tm=512, tn=512):
    """Computes x @ w_t + b + other with a Pallas TPU kernel.

    x:     [M, K] float32
    w_t:   [K, N] float32  (PyTorch weight [N, K] transposed)
    b:     [1, N] float32
    other: [M, N] float32
    """
    M, K = x.shape
    Kw, N = w_t.shape
    assert Kw == K and b.shape == (1, N) and other.shape == (M, N)

    if M <= tm and N <= tn:
        # Single-block fast path (covers the real Linear(3, 8) case):
        # full-array blocks, no grid, no padding, no slicing, no scratch.
        return pl.pallas_call(
            linear_add_kernel,
            out_shape=jax.ShapeDtypeStruct((M, N), x.dtype),
            in_specs=[
                pl.BlockSpec((M, K), lambda: (0, 0)),   # x
                pl.BlockSpec((K, N), lambda: (0, 0)),   # w_t
                pl.BlockSpec((1, N), lambda: (0, 0)),   # bias
                pl.BlockSpec((M, N), lambda: (0, 0)),   # other
            ],
            out_specs=pl.BlockSpec((M, N), lambda: (0, 0)),
        )(x, w_t, b, other)

    # General path: tile M and N only; every block carries the full K extent,
    # so there is no reduction grid axis and no accumulator scratch.  Tiles
    # are clamped to the (8,128)-rounded problem so nothing is over-padded.
    tm_eff = min(tm, _round_up(M, 8))
    tn_eff = min(tn, _round_up(N, 128))
    grid = (pl.cdiv(M, tm_eff), pl.cdiv(N, tn_eff))

    return pl.pallas_call(
        linear_add_kernel,
        out_shape=jax.ShapeDtypeStruct((M, N), x.dtype),
        grid_spec=pltpu.PrefetchScalarGridSpec(
            num_scalar_prefetch=0,
            grid=grid,
            in_specs=[
                pl.BlockSpec((tm_eff, K), lambda i, j: (i, 0)),        # x
                pl.BlockSpec((K, tn_eff), lambda i, j: (0, j)),        # w_t
                pl.BlockSpec((1, tn_eff), lambda i, j: (0, j)),        # bias
                pl.BlockSpec((tm_eff, tn_eff), lambda i, j: (i, j)),   # other
            ],
            out_specs=pl.BlockSpec((tm_eff, tn_eff), lambda i, j: (i, j)),
        ),
        compiler_params=pltpu.CompilerParams(
            dimension_semantics=("parallel", "parallel"),
        ),
    )(x, w_t, b, other)


if __name__ == "__main__":
    key = jax.random.PRNGKey(0)
    k_x, k_other, k_w, k_b = jax.random.split(key, 4)

    # Shapes implied by the module: nn.Linear(3, 8) applied to x1 of shape (3, 3).
    M, K, N = 3, 3, 8

    # Deterministic "parameters" (mimicking nn.Linear's uniform init range).
    bound = 1.0 / jnp.sqrt(K)
    weight = jax.random.uniform(k_w, (N, K), jnp.float32, -bound, bound)  # [out, in]
    bias = jax.random.uniform(k_b, (N,), jnp.float32, -bound, bound)

    x1 = jax.random.normal(k_x, (M, K), jnp.float32)
    other = jax.random.normal(k_other, (M, N), jnp.float32)

    out = linear_add(x1, weight.T, bias.reshape(1, N), other)
    jax.block_until_ready(out)
    assert out.shape == (M, N)

    ref = x1 @ weight.T + bias + other
    assert jnp.allclose(out, ref, atol=3e-2, rtol=3e-2), "mismatch on Linear(3,8) case"

    # Second check that exercises the tiled (2x2 grid, full-K blocks) path.
    M2, K2, N2 = 1024, 512, 1024
    kx2, kw2, kb2, ko2 = jax.random.split(jax.random.PRNGKey(1), 4)
    x2 = jax.random.normal(kx2, (M2, K2), jnp.float32)
    w2 = jax.random.normal(kw2, (K2, N2), jnp.float32) * 0.05
    b2 = jax.random.normal(kb2, (1, N2), jnp.float32)
    o2 = jax.random.normal(ko2, (M2, N2), jnp.float32)
    out2 = linear_add(x2, w2, b2, o2)
    jax.block_until_ready(out2)
    ref2 = (
        jnp.dot(x2, w2, precision=jax.lax.Precision.HIGHEST,
                preferred_element_type=jnp.float32)
        + b2 + o2
    )
    assert jnp.allclose(out2, ref2, atol=5e-2, rtol=5e-2), "mismatch on tiled case"

    print("KERNEL_OK")
</pallas_src>

<mosaic_0001>
module attributes {stable_mosaic.version = 11 : i64} {
  func.func @linear_add_kernel(%arg0: memref<3x3xf32, #tpu.memory_space<vmem>>, %arg1: memref<3x8xf32, #tpu.memory_space<vmem>>, %arg2: memref<1x8xf32, #tpu.memory_space<vmem>>, %arg3: memref<3x8xf32, #tpu.memory_space<vmem>>, %arg4: memref<3x8xf32, #tpu.memory_space<vmem>>) attributes {dimension_semantics = [], scalar_prefetch = 0 : i64, scratch_operands = 0 : i64, tpu.core_type = #tpu.core_type<tc>} {
    %c0 = arith.constant 0 : index
    %c0_0 = arith.constant 0 : index
    %0 = vector.load %arg0[%c0, %c0_0] : memref<3x3xf32, #tpu.memory_space<vmem>>, vector<3x3xf32>
    %c0_1 = arith.constant 0 : index
    %c0_2 = arith.constant 0 : index
    %1 = vector.load %arg1[%c0_1, %c0_2] : memref<3x8xf32, #tpu.memory_space<vmem>>, vector<3x8xf32>
    %cst = arith.constant dense<0.000000e+00> : vector<3x8xf32>
    %2 = tpu.matmul %0, %1, %cst {dimension_numbers = #tpu.dot_dimension_numbers<[1], [0], [0], [1], [0, 0, 1, 1], [], []>} : vector<3x3xf32>, vector<3x8xf32>, vector<3x8xf32> -> vector<3x8xf32>
    %c0_3 = arith.constant 0 : index
    %c0_4 = arith.constant 0 : index
    %3 = vector.load %arg2[%c0_3, %c0_4] : memref<1x8xf32, #tpu.memory_space<vmem>>, vector<1x8xf32>
    %4 = vector.broadcast %3 : vector<1x8xf32> to vector<3x8xf32>
    %5 = arith.addf %2, %4 : vector<3x8xf32>
    %c0_5 = arith.constant 0 : index
    %c0_6 = arith.constant 0 : index
    %6 = vector.load %arg3[%c0_5, %c0_6] : memref<3x8xf32, #tpu.memory_space<vmem>>, vector<3x8xf32>
    %7 = arith.addf %5, %6 : vector<3x8xf32>
    %c0_7 = arith.constant 0 : index
    %c0_8 = arith.constant 0 : index
    %8 = vector.load %arg4[%c0_7, %c0_8] : memref<3x8xf32, #tpu.memory_space<vmem>>, vector<3x8xf32>
    tpu.vector_store %arg4[%c0_7, %c0_8], %7 {strides = array<i32>} : memref<3x8xf32, #tpu.memory_space<vmem>>, vector<3x8xf32>,
    return
  }
}

</mosaic_0001>

<llo_original>
// kernel: linear_add.1
$region0: #{linear_add.1}
  #allocation0 [shape = 'u32[]', space=smem, size = 0x4, offset = 0x4, fixed_abs, tag = 'smem constant byte address 0x4 - core index']
  #allocation1 [shape = 'u32[144,128]{1,0:T(1,128)}', space=vmem, size = 0x12000, scoped, tag = 'internal scratch']
  %s0 = inlined_call_operand.hbm [shape: f32[3,3], index: 0, kind: input, shape index: {}]
  %s1 = inlined_call_operand.hbm [shape: f32[3,8], index: 1, kind: input, shape index: {}]
  %s2 = inlined_call_operand.vmem [shape: f32[1,8], index: 2, kind: input, shape index: {}]
  %s3 = inlined_call_operand.vmem [shape: f32[3,8], index: 3, kind: input, shape index: {}]
  %s4 = inlined_call_operand.hbm [shape: f32[3,8], index: 4, kind: output, shape index: {}]
  %s5 = sld [smem:[#allocation0]]
  $region34: #{linear_add.1} parent=0
    _
  %s7 = ssub.s32 1, %s5
  %s8 = scalar_select 0, %s7, %s5
  $region1: #{linear_add.1} parent=0
    #allocation2 [shape = 'u8[2048]{0}', space=vmem, size = 0x800, scoped, tag = 'input window, operand 0, single buffered']
    #allocation3 [shape = 's32[1]{0}', space=sflag, size = 0x4, scoped, tag = 'scoped memory for linear_add.1']
    #allocation4 [shape = 's32[1]{0}', space=sflag, size = 0x4, scoped, tag = 'scoped memory for linear_add.1']
    #allocation5 [shape = 'u8[2048]{0}', space=vmem, size = 0x800, scoped, tag = 'input window, operand 1, single buffered']
    #allocation6 [shape = 's32[1]{0}', space=sflag, size = 0x4, scoped, tag = 'scoped memory for linear_add.1']
    #allocation7 [shape = 'u8[2048]{0}', space=vmem, size = 0x800, scoped, tag = 'output window, operand 0, single buffered']
    %9 = vsyncpa [#allocation3], 0
    %10 = vsyncpa [#allocation6], 0
    %11 = vsyncpa [#allocation4], 0
    // Predicated region
    $region2: #{linear_add.1} parent=1 // pred_check
      _
    $region3: #{linear_add.1} parent=1 // pred_check_branch
      %13 = sbr.rel (0) target = $region5
    $region4: #{linear_add.1} parent=1 // pred_region
      %s15 = ssub.s32 64, 64
      %16 = vsyncadd [#allocation3], %s15
      %s18 = sshll.u32 [#allocation2], 4
      %s19 = int_to_ptr.vmem [resolvable:$true] %s18
      %21 = dma.hbm_to_vmem [thread:$0]  %s0, 64, %s19, [#allocation3]
    $region5: #{linear_add.1} parent=1 // pred_fallthru
      _
    // Predicated region
    $region6: #{linear_add.1} parent=1 // pred_check
      _
    $region7: #{linear_add.1} parent=1 // pred_check_branch
      %23 = sbr.rel (0) target = $region9
    $region8: #{linear_add.1} parent=1 // pred_region
      %s25 = ssub.s32 64, 64
      %26 = vsyncadd [#allocation6], %s25
      %s28 = sshll.u32 [#allocation5], 4
      %s29 = int_to_ptr.vmem [resolvable:$true] %s28
      %31 = dma.hbm_to_vmem [thread:$0]  %s1, 64, %s29, [#allocation6]
    $region9: #{linear_add.1} parent=1 // pred_fallthru
      _
    // Predicated region
    $region10: #{linear_add.1} parent=1 // pred_check
      _
    $region11: #{linear_add.1} parent=1 // pred_check_branch
      %33 = sbr.rel (0) target = $region13
    $region12: #{linear_add.1} parent=1 // pred_region
      _
    $region13: #{linear_add.1} parent=1 // pred_fallthru
      _
    // Predicated region
    $region14: #{linear_add.1} parent=1 // pred_check
      _
    $region15: #{linear_add.1} parent=1 // pred_check_branch
      %35 = sbr.rel (0) target = $region17
    $region16: #{linear_add.1} parent=1 // pred_region
      _
    $region17: #{linear_add.1} parent=1 // pred_fallthru
      _
    // Predicated region
    $region18: #{linear_add.1} parent=1 // pred_check
      _
    $region19: #{linear_add.1} parent=1 // pred_check_branch
      %37 = sbr.rel (0) target = $region21
    $region20: #{linear_add.1} parent=1 // pred_region
      %38 = dma.done [#allocation3], 64
    $region21: #{linear_add.1} parent=1 // pred_fallthru
      _
    // Predicated region
    $region22: #{linear_add.1} parent=1 // pred_check
      _
    $region23: #{linear_add.1} parent=1 // pred_check_branch
      %40 = sbr.rel (0) target = $region25
    $region24: #{linear_add.1} parent=1 // pred_region
      %41 = dma.done [#allocation6], 64
    $region25: #{linear_add.1} parent=1 // pred_fallthru
      _
    %v42 = vld [vmem:[#allocation2] sm:$0x7]
    %v43 = vld [vmem:[#allocation5] sm:$0x7]
    %v44 = vld [vmem:[%s2] sm:$0x1]
    %v46 = vlaneseq
    %v47 = vshrl.u32 %v46, 7
    %v48 = vsub.s32 0, %v47
    %v49 = vrot.slane %v44, %v48
    %vm51 = vcmask 23552
    %v53 = vsel %vm51, %v42, 0
    %vm55 = vcmask 1042432
    %v57 = vsel %vm55, %v43, 0
    %59 = vmatprep.subr.mxu0 0.0
    %60 = vmatpush1.msra.mxu0 0.0
    %61 = vmatprep.subr.mxu0 0.0
    %62 = vmatpush1.msra.mxu0 0.0
    %63 = vmatprep.subr.mxu0 0.0
    %64 = vmatpush1.msra.mxu0 0.0
    %65 = vmatprep.subr.mxu0 0.0
    %66 = vmatpush1.msra.mxu0 0.0
    %67 = vmatprep.subr.mxu0 0.0
    %68 = vmatpush1.msra.mxu0 0.0
    %69 = vmatprep.subr.mxu0 0.0
    %70 = vmatpush1.msra.mxu0 0.0
    %71 = vmatprep.subr.mxu0 0.0
    %72 = vmatpush1.msra.mxu0 0.0
    %73 = vmatprep.subr.mxu0 0.0
    %74 = vmatpush1.msra.mxu0 0.0
    %75 = vmatprep.subr.mxu0 0.0
    %76 = vmatpush1.msra.mxu0 0.0
    %77 = vmatprep.subr.mxu0 0.0
    %78 = vmatpush1.msra.mxu0 0.0
    %79 = vmatprep.subr.mxu0 0.0
    %80 = vmatpush1.msra.mxu0 0.0
    %81 = vmatprep.subr.mxu0 0.0
    %82 = vmatpush1.msra.mxu0 0.0
    %83 = vmatprep.subr.mxu0 0.0
    %84 = vmatpush1.msra.mxu0 0.0
    %85 = vmatprep.subr.mxu0 0.0
    %86 = vmatpush1.msra.mxu0 0.0
    %87 = vmatprep.subr.mxu0 0.0
    %88 = vmatpush1.msra.mxu0 0.0
    %89 = vmatprep.subr.mxu0 0.0
    %90 = vmatpush1.msra.mxu0 %v57
    %91 = vmatprep.subr.mxu0 0.0
    %92 = vmatpush2.msra.mxu0 0.0
    %93 = vmatprep.subr.mxu0 0.0
    %94 = vmatpush2.msra.mxu0 0.0
    %95 = vmatprep.subr.mxu0 0.0
    %96 = vmatpush2.msra.mxu0 0.0
    %97 = vmatprep.subr.mxu0 0.0
    %98 = vmatpush2.msra.mxu0 0.0
    %99 = vmatprep.subr.mxu0 0.0
    %100 = vmatpush2.msra.mxu0 0.0
    %101 = vmatprep.subr.mxu0 0.0
    %102 = vmatpush2.msra.mxu0 0.0
    %103 = vmatprep.subr.mxu0 0.0
    %104 = vmatpush2.msra.mxu0 0.0
    %105 = vmatprep.subr.mxu0 0.0
    %106 = vmatpush2.msra.mxu0 0.0
    %107 = vmatprep.subr.mxu0 0.0
    %108 = vmatpush2.msra.mxu0 0.0
    %109 = vmatprep.subr.mxu0 0.0
    %110 = vmatpush2.msra.mxu0 0.0
    %111 = vmatprep.subr.mxu0 0.0
    %112 = vmatpush2.msra.mxu0 0.0
    %113 = vmatprep.subr.mxu0 0.0
    %114 = vmatpush2.msra.mxu0 0.0
    %115 = vmatprep.subr.mxu0 0.0
    %116 = vmatpush2.msra.mxu0 0.0
    %117 = vmatprep.subr.mxu0 0.0
    %118 = vmatpush2.msra.mxu0 0.0
    %119 = vmatprep.subr.mxu0 0.0
    %120 = vmatpush2.msra.mxu0 0.0
    %121 = vmatprep.subr.mxu0 0.0
    %122 = vmatpush2.msra.mxu0 0.0
    %123 = vmatprep.mubr.f32.mxu0 0.0
    %124 = vmatmul.mubr.f32.gmra.mxu0 %v53
    %v125 = vpop.f32.mrf.mxu0
    %v126 = vadd.f32 %v49, %v125
    %v127 = vpop.f32.mrf.mxu0
    %128 = vdwg.mxu0
    %v129 = vld [vmem:[%s3] sm:$0x7]
    %v130 = vadd.f32 %v126, %v129
    %vm131 = vcmask 59392
    %132 = vst.msk [vmem:[#allocation7] sm:$0x7] %vm131, %v130
    // Predicated region
    $region26: #{linear_add.1} parent=1 // pred_check
      _
    $region27: #{linear_add.1} parent=1 // pred_check_branch
      %134 = sbr.rel (0) target = $region29
    $region28: #{linear_add.1} parent=1 // pred_region
      %s136 = ssub.s32 64, 64
      %137 = vsyncadd [#allocation4], %s136
      %s139 = sshll.u32 [#allocation7], 4
      %s140 = int_to_ptr.vmem [resolvable:$true] %s139
      %142 = dma.vmem_to_hbm [thread:$0]  %s140, 64, %s4, [#allocation4]
    $region29: #{linear_add.1} parent=1 // pred_fallthru
      _
    // Predicated region
    $region30: #{linear_add.1} parent=1 // pred_check
      _
    $region31: #{linear_add.1} parent=1 // pred_check_branch
      %144 = sbr.rel (0) target = $region33
    $region32: #{linear_add.1} parent=1 // pred_region
      %145 = dma.done [#allocation4], 64
    $region33: #{linear_add.1} parent=1 // pred_fallthru
      _
    %146 = vsyncpa [#allocation3], 1
    %147 = vsyncpa [#allocation6], 1
    %148 = vsyncpa [#allocation4], 1

</llo_original>
